<compile_context>
chip_gen: v6e
topology: v6e:2x2x1
jax: 0.10.0
libtpu: 0.0.40
codegen_flags: <defaults>
</compile_context>

<pallas_src>
import functools
import math

import jax
import jax.numpy as jnp
from jax import lax
from jax.experimental import pallas as pl
from jax.experimental.pallas import tpu as pltpu


def _sdpa_kernel(*refs, scale, use_bf16, has_mask):
    if has_mask:
        q_ref, k_ref, v_ref, mask_ref, out_ref, attn_ref = refs
    else:
        q_ref, k_ref, v_ref, out_ref, attn_ref = refs

    bt, h, s, d = q_ref.shape

    # Collapse (Bt, H) into one batch dim for the MXU (leading-dim reshape only).
    q = q_ref[...].reshape(bt * h, s, d)
    k = k_ref[...].reshape(bt * h, s, d)
    v = v_ref[...].reshape(bt * h, s, d)

    # Fold the 1/sqrt(hidden_units) scale into the smaller Q operand.
    q = q * jnp.float32(scale)
    if use_bf16:
        q = q.astype(jnp.bfloat16)
        k = k.astype(jnp.bfloat16)

    # Batched Q @ K^T: contract on D directly; no explicit transpose of K.
    scores = jnp.einsum("gqd,gkd->gqk", q, k,
                        preferred_element_type=jnp.float32)        # (Bt*H, S, S)
    scores = scores.reshape(bt, h, s, s)

    # masked_fill(mask == 0, -1e9); mask is head-broadcast.
    if has_mask:
        keep = mask_ref[...] != 0                                  # (Bt, 1, S, S)
    else:
        row = lax.broadcasted_iota(jnp.int32, (s, s), 0)
        col = lax.broadcasted_iota(jnp.int32, (s, s), 1)
        keep = (col <= row)[None, None, :, :]                      # causal
    scores = jnp.where(keep, scores, jnp.float32(-1.0e9))

    # Numerically stable softmax over the last axis (fully-masked rows give a
    # uniform distribution, exactly like F.softmax with all -1e9 logits).
    s_max = jnp.max(scores, axis=-1, keepdims=True)
    p = jnp.exp(scores - s_max)
    denom = jnp.sum(p, axis=-1, keepdims=True)                     # (Bt, H, S, 1)

    # EUP approximate reciprocal + one Newton step on the tiny denominator
    # (nearly free), then a single VPU multiply over the S*S block.
    inv = pl.reciprocal(denom, approx=True)
    inv = inv * (jnp.float32(2.0) - denom * inv)
    attn = p * inv                                                 # (Bt, H, S, S)
    # TODO(synk): training-mode dropout on attn not implemented (eval: identity).

    attn_ref[...] = attn.astype(attn_ref.dtype)

    pv_lhs = attn.reshape(bt * h, s, s)
    if use_bf16:
        pv_lhs = pv_lhs.astype(jnp.bfloat16)
        v = v.astype(jnp.bfloat16)
    out = jnp.einsum("gqk,gkd->gqd", pv_lhs, v,
                     preferred_element_type=jnp.float32)           # (Bt*H, S, D)

    # Lane-dense store: [Bt, S, H*D] slab (last dim H*D, not D).
    out = out.reshape(bt, h, s, d).transpose(0, 2, 1, 3).reshape(bt, s, h * d)
    out_ref[...] = out.astype(out_ref.dtype)


def scaled_dot_product_attention(Q, K, V, mask, hidden_units, *,
                                 is_causal=False, use_bf16_matmul=False,
                                 attn_dtype=jnp.float32, batch_block=None):
    """Q, K, V: [B, H, S, D]; mask: [B, 1, S, S] (0 => mask out, head-broadcast).

    Returns (output [B, H, S, D], attn_dist [B, H, S, S])."""
    B, H, S, D = Q.shape
    scale = 1.0 / math.sqrt(hidden_units)
    attn_dtype = jnp.dtype(attn_dtype)
    q_bytes = jnp.dtype(Q.dtype).itemsize
    mask_bytes = 0 if is_causal else jnp.dtype(mask.dtype).itemsize

    # Per-batch-element bytes moved per step (q, k, v, out slab, mask, attn).
    per_b = (4 * H * S * D * q_bytes
             + S * S * mask_bytes
             + H * S * S * attn_dtype.itemsize)

    if batch_block is None:
        budget = 4 * 1024 * 1024                  # ~4 MiB of block data / step
        bt = max(1, min(B, budget // max(per_b, 1)))
        if B >= 2:                                # keep >= 2 grid steps (megacore)
            bt = min(bt, max(1, B // 2))
        while B % bt:                             # keep blocks non-ragged
            bt -= 1
    else:
        bt = batch_block
        assert B % bt == 0

    # Scoped VMEM sized to the actual blocks: x2 double buffers + f32 S*S
    # temporaries (scores, p, attn) + headroom.
    block_bytes = bt * per_b
    temp_bytes = 3 * bt * H * S * S * 4
    vmem_limit = int(min(64 << 20,
                         max(16 << 20, 2 * block_bytes + temp_bytes + (4 << 20))))

    kernel = functools.partial(_sdpa_kernel, scale=scale,
                               use_bf16=use_bf16_matmul,
                               has_mask=not is_causal)

    in_specs = [
        pl.BlockSpec((bt, H, S, D), lambda b: (b, 0, 0, 0)),   # Q
        pl.BlockSpec((bt, H, S, D), lambda b: (b, 0, 0, 0)),   # K
        pl.BlockSpec((bt, H, S, D), lambda b: (b, 0, 0, 0)),   # V
    ]
    inputs = [Q, K, V]
    if not is_causal:
        in_specs.append(pl.BlockSpec((bt, 1, S, S), lambda b: (b, 0, 0, 0)))
        inputs.append(mask)                                    # consumed as-is

    out_slab, attn = pl.pallas_call(
        kernel,
        out_shape=(
            jax.ShapeDtypeStruct((B, S, H * D), Q.dtype),      # lane-dense out
            jax.ShapeDtypeStruct((B, H, S, S), attn_dtype),    # attn_dist
        ),
        grid_spec=pltpu.PrefetchScalarGridSpec(
            num_scalar_prefetch=0,
            grid=(B // bt,),
            in_specs=in_specs,
            out_specs=[
                pl.BlockSpec((bt, S, H * D), lambda b: (b, 0, 0)),
                pl.BlockSpec((bt, H, S, S), lambda b: (b, 0, 0, 0)),
            ],
        ),
        compiler_params=pltpu.CompilerParams(
            dimension_semantics=("parallel",),
            vmem_limit_bytes=vmem_limit,
        ),
    )(*inputs)

    # Layout plumbing only: [B, S, H*D] -> [B, H, S, D].
    out = out_slab.reshape(B, S, H, D).transpose(0, 2, 1, 3)
    return out, attn


def _reference(Q, K, V, mask, hidden_units):
    scores = jnp.einsum("bhsd,bhtd->bhst", Q, K) / math.sqrt(hidden_units)
    scores = jnp.where(mask == 0, -1.0e9, scores)
    attn = jax.nn.softmax(scores, axis=-1)
    out = jnp.einsum("bhst,bhtd->bhsd", attn, V)
    return out, attn


if __name__ == "__main__":
    # Small shapes consistent with SASRec multi-head attention:
    # hidden_units = 32, num_heads = 2 -> head_dim = 16, seq = 8, batch = 2.
    B, H, S, D = 2, 2, 8, 16
    hidden_units = H * D      # the module scales by sqrt(hidden_units)
    dropout_rate = 0.1        # unused in eval-mode forward (identity)

    key = jax.random.PRNGKey(0)
    kq, kk, kv = jax.random.split(key, 3)
    Q = jax.random.normal(kq, (B, H, S, D), dtype=jnp.float32)
    K = jax.random.normal(kk, (B, H, S, D), dtype=jnp.float32)
    V = jax.random.normal(kv, (B, H, S, D), dtype=jnp.float32)

    # Causal mask, broadcast over heads: [B, 1, S, S], 1 = attend, 0 = masked.
    causal = jnp.tril(jnp.ones((S, S), dtype=jnp.float32))
    mask = jnp.broadcast_to(causal, (B, 1, S, S))

    ref_out, ref_attn = _reference(Q, K, V, mask, hidden_units)

    # Explicit-mask path (general masks, exact module semantics).
    out, attn = scaled_dot_product_attention(Q, K, V, mask, hidden_units)
    jax.block_until_ready((out, attn))
    assert jnp.allclose(out, ref_out, atol=1e-5, rtol=1e-5)
    assert jnp.allclose(attn, ref_attn, atol=1e-5, rtol=1e-5)

    # In-kernel causal-mask fast path (no [B,1,S,S] HBM mask stream).
    out_c, attn_c = scaled_dot_product_attention(Q, K, V, None, hidden_units,
                                                 is_causal=True)
    jax.block_until_ready((out_c, attn_c))
    assert jnp.allclose(out_c, ref_out, atol=1e-5, rtol=1e-5)
    assert jnp.allclose(attn_c, ref_attn, atol=1e-5, rtol=1e-5)

    print("KERNEL_OK")
</pallas_src>

<mosaic_0001>
module attributes {stable_mosaic.version = 11 : i64} {
  func.func @_sdpa_kernel(%arg0: i32, %arg1: memref<1x2x8x16xf32, #tpu.memory_space<vmem>>, %arg2: memref<1x2x8x16xf32, #tpu.memory_space<vmem>>, %arg3: memref<1x2x8x16xf32, #tpu.memory_space<vmem>>, %arg4: memref<1x1x8x8xf32, #tpu.memory_space<vmem>>, %arg5: memref<1x8x32xf32, #tpu.memory_space<vmem>>, %arg6: memref<1x2x8x8xf32, #tpu.memory_space<vmem>>) attributes {dimension_semantics = [#tpu.dimension_semantics<parallel>], iteration_bounds = array<i64: 2>, scalar_prefetch = 0 : i64, scratch_operands = 0 : i64, tpu.core_type = #tpu.core_type<tc>, window_params = [{transform_indices = @transform_0, window_bounds = array<i64: 1, 2, 8, 16>}, {transform_indices = @transform_1, window_bounds = array<i64: 1, 2, 8, 16>}, {transform_indices = @transform_2, window_bounds = array<i64: 1, 2, 8, 16>}, {transform_indices = @transform_3, window_bounds = array<i64: 1, 1, 8, 8>}, {transform_indices = @transform_4, window_bounds = array<i64: 1, 8, 32>}, {transform_indices = @transform_5, window_bounds = array<i64: 1, 2, 8, 8>}]} {
    %c0 = arith.constant 0 : index
    %c0_0 = arith.constant 0 : index
    %c0_1 = arith.constant 0 : index
    %c0_2 = arith.constant 0 : index
    %0 = vector.load %arg1[%c0, %c0_0, %c0_1, %c0_2] : memref<1x2x8x16xf32, #tpu.memory_space<vmem>>, vector<1x2x8x16xf32>
    %1 = vector.shape_cast %0 : vector<1x2x8x16xf32> to vector<2x8x16xf32>
    %c0_3 = arith.constant 0 : index
    %c0_4 = arith.constant 0 : index
    %c0_5 = arith.constant 0 : index
    %c0_6 = arith.constant 0 : index
    %2 = vector.load %arg2[%c0_3, %c0_4, %c0_5, %c0_6] : memref<1x2x8x16xf32, #tpu.memory_space<vmem>>, vector<1x2x8x16xf32>
    %3 = vector.shape_cast %2 : vector<1x2x8x16xf32> to vector<2x8x16xf32>
    %c0_7 = arith.constant 0 : index
    %c0_8 = arith.constant 0 : index
    %c0_9 = arith.constant 0 : index
    %c0_10 = arith.constant 0 : index
    %4 = vector.load %arg3[%c0_7, %c0_8, %c0_9, %c0_10] : memref<1x2x8x16xf32, #tpu.memory_space<vmem>>, vector<1x2x8x16xf32>
    %5 = vector.shape_cast %4 : vector<1x2x8x16xf32> to vector<2x8x16xf32>
    %cst = arith.constant 0.176776692 : f32
    %6 = vector.broadcast %cst : f32 to vector<2x8x16xf32>
    %7 = arith.mulf %1, %6 : vector<2x8x16xf32>
    "tpu.trace_start"() <{level = 10 : i32, message = "gqd,gkd->gqk"}> : () -> ()
    %cst_11 = arith.constant dense<0.000000e+00> : vector<2x8x8xf32>
    %8 = tpu.matmul %7, %3, %cst_11 {dimension_numbers = #tpu.dot_dimension_numbers<[2], [2], [1], [1], [0, 0, 0, 1, 1, 1], [0], [0]>} : vector<2x8x16xf32>, vector<2x8x16xf32>, vector<2x8x8xf32> -> vector<2x8x8xf32>
    "tpu.trace_stop"() : () -> ()
    %9 = vector.shape_cast %8 : vector<2x8x8xf32> to vector<1x2x8x8xf32>
    %c0_12 = arith.constant 0 : index
    %c0_13 = arith.constant 0 : index
    %c0_14 = arith.constant 0 : index
    %c0_15 = arith.constant 0 : index
    %10 = vector.load %arg4[%c0_12, %c0_13, %c0_14, %c0_15] : memref<1x1x8x8xf32, #tpu.memory_space<vmem>>, vector<1x1x8x8xf32>
    %cst_16 = arith.constant 0.000000e+00 : f32
    %11 = vector.broadcast %cst_16 : f32 to vector<1x1x8x8xf32>
    %12 = arith.cmpf one, %10, %11 : vector<1x1x8x8xf32>
    %cst_17 = arith.constant -1.000000e+09 : f32
    %13 = vector.shape_cast %12 : vector<1x1x8x8xi1> to vector<1x1x8x8xi1>
    %14 = vector.broadcast %13 : vector<1x1x8x8xi1> to vector<1x2x8x8xi1>
    %15 = vector.broadcast %cst_17 : f32 to vector<1x2x8x8xf32>
    %16 = arith.select %14, %9, %15 : vector<1x2x8x8xi1>, vector<1x2x8x8xf32>
    %cst_18 = arith.constant dense<0xFF800000> : vector<1x2x8xf32>
    %17 = vector.multi_reduction <maximumf>, %16, %cst_18 [3] : vector<1x2x8x8xf32> to vector<1x2x8xf32>
    %18 = vector.shape_cast %17 : vector<1x2x8xf32> to vector<1x2x8x1xf32>
    %19 = vector.broadcast %18 : vector<1x2x8x1xf32> to vector<1x2x8x8xf32>
    %20 = arith.subf %16, %19 : vector<1x2x8x8xf32>
    %21 = math.exp %20 : vector<1x2x8x8xf32>
    %cst_19 = arith.constant dense<0.000000e+00> : vector<1x2x8xf32>
    %22 = vector.multi_reduction <add>, %21, %cst_19 [3] : vector<1x2x8x8xf32> to vector<1x2x8xf32>
    %23 = vector.shape_cast %22 : vector<1x2x8xf32> to vector<1x2x8x1xf32>
    %24 = tpu.reciprocal %23 {approx = true} : vector<1x2x8x1xf32> -> vector<1x2x8x1xf32>
    %25 = arith.mulf %23, %24 : vector<1x2x8x1xf32>
    %cst_20 = arith.constant 2.000000e+00 : f32
    %26 = vector.broadcast %cst_20 : f32 to vector<1x2x8x1xf32>
    %27 = arith.subf %26, %25 : vector<1x2x8x1xf32>
    %28 = arith.mulf %24, %27 : vector<1x2x8x1xf32>
    %29 = vector.broadcast %28 : vector<1x2x8x1xf32> to vector<1x2x8x8xf32>
    %30 = arith.mulf %21, %29 : vector<1x2x8x8xf32>
    %c0_21 = arith.constant 0 : index
    %c0_22 = arith.constant 0 : index
    %c0_23 = arith.constant 0 : index
    %c0_24 = arith.constant 0 : index
    %31 = vector.load %arg6[%c0_21, %c0_22, %c0_23, %c0_24] : memref<1x2x8x8xf32, #tpu.memory_space<vmem>>, vector<1x2x8x8xf32>
    tpu.vector_store %arg6[%c0_21, %c0_22, %c0_23, %c0_24], %30 {strides = array<i32>} : memref<1x2x8x8xf32, #tpu.memory_space<vmem>>, vector<1x2x8x8xf32>,
    %32 = vector.shape_cast %30 : vector<1x2x8x8xf32> to vector<2x8x8xf32>
    "tpu.trace_start"() <{level = 10 : i32, message = "gqk,gkd->gqd"}> : () -> ()
    %cst_25 = arith.constant dense<0.000000e+00> : vector<2x8x16xf32>
    %33 = tpu.matmul %32, %5, %cst_25 {dimension_numbers = #tpu.dot_dimension_numbers<[2], [1], [1], [2], [0, 0, 0, 1, 1, 2], [0], [0]>} : vector<2x8x8xf32>, vector<2x8x16xf32>, vector<2x8x16xf32> -> vector<2x8x16xf32>
    "tpu.trace_stop"() : () -> ()
    %34 = vector.shape_cast %33 : vector<2x8x16xf32> to vector<1x2x8x16xf32>
    %35 = tpu.transpose %34, [0, 2, 1, 3] : vector<1x2x8x16xf32> -> vector<1x8x2x16xf32>
    %36 = vector.shape_cast %35 : vector<1x8x2x16xf32> to vector<1x8x32xf32>
    %c0_26 = arith.constant 0 : index
    %c0_27 = arith.constant 0 : index
    %c0_28 = arith.constant 0 : index
    %37 = vector.load %arg5[%c0_26, %c0_27, %c0_28] : memref<1x8x32xf32, #tpu.memory_space<vmem>>, vector<1x8x32xf32>
    tpu.vector_store %arg5[%c0_26, %c0_27, %c0_28], %36 {strides = array<i32>} : memref<1x8x32xf32, #tpu.memory_space<vmem>>, vector<1x8x32xf32>,
    return
  }
  func.func @transform_0(%arg0: i32) -> (i32, i32, i32, i32) {
    %c0_i32 = arith.constant 0 : i32
    %c0_i32_0 = arith.constant 0 : i32
    %c0_i32_1 = arith.constant 0 : i32
    %c0_i32_2 = arith.constant 0 : i32
    return %arg0, %c0_i32, %c0_i32_0, %c0_i32_1 : i32, i32, i32, i32
  }
  func.func @transform_1(%arg0: i32) -> (i32, i32, i32, i32) {
    %c0_i32 = arith.constant 0 : i32
    %c0_i32_0 = arith.constant 0 : i32
    %c0_i32_1 = arith.constant 0 : i32
    %c0_i32_2 = arith.constant 0 : i32
    return %arg0, %c0_i32, %c0_i32_0, %c0_i32_1 : i32, i32, i32, i32
  }
  func.func @transform_2(%arg0: i32) -> (i32, i32, i32, i32) {
    %c0_i32 = arith.constant 0 : i32
    %c0_i32_0 = arith.constant 0 : i32
    %c0_i32_1 = arith.constant 0 : i32
    %c0_i32_2 = arith.constant 0 : i32
    return %arg0, %c0_i32, %c0_i32_0, %c0_i32_1 : i32, i32, i32, i32
  }
  func.func @transform_3(%arg0: i32) -> (i32, i32, i32, i32) {
    %c0_i32 = arith.constant 0 : i32
    %c0_i32_0 = arith.constant 0 : i32
    %c0_i32_1 = arith.constant 0 : i32
    %c0_i32_2 = arith.constant 0 : i32
    return %arg0, %c0_i32, %c0_i32_0, %c0_i32_1 : i32, i32, i32, i32
  }
  func.func @transform_4(%arg0: i32) -> (i32, i32, i32) {
    %c0_i32 = arith.constant 0 : i32
    %c0_i32_0 = arith.constant 0 : i32
    %c0_i32_1 = arith.constant 0 : i32
    return %arg0, %c0_i32, %c0_i32_0 : i32, i32, i32
  }
  func.func @transform_5(%arg0: i32) -> (i32, i32, i32, i32) {
    %c0_i32 = arith.constant 0 : i32
    %c0_i32_0 = arith.constant 0 : i32
    %c0_i32_1 = arith.constant 0 : i32
    %c0_i32_2 = arith.constant 0 : i32
    return %arg0, %c0_i32, %c0_i32_0, %c0_i32_1 : i32, i32, i32, i32
  }
}

</mosaic_0001>

<llo_original>
// kernel: tpu_custom_call.1
$region0: #{tpu_custom_call.1}
  #allocation0 [shape = 'u32[]', space=smem, size = 0x4, offset = 0x4, fixed_abs, tag = 'smem constant byte address 0x4 - core index']
  #allocation1 [shape = 'u32[144,128]{1,0:T(1,128)}', space=vmem, size = 0x12000, scoped, tag = 'internal scratch']
  %s0 = inlined_call_operand.hbm [shape: f32[2,2,8,16], index: 0, kind: input, shape index: {}]
  %s1 = inlined_call_operand.hbm [shape: f32[2,2,8,16], index: 1, kind: input, shape index: {}]
  %s2 = inlined_call_operand.hbm [shape: f32[2,2,8,16], index: 2, kind: input, shape index: {}]
  %s3 = inlined_call_operand.hbm [shape: f32[2,1,8,8], index: 3, kind: input, shape index: {}]
  %s4 = inlined_call_operand.hbm [shape: f32[2,8,32], index: 4, kind: output, shape index: {0}]
  %s5 = inlined_call_operand.hbm [shape: f32[2,2,8,8], index: 5, kind: output, shape index: {1}]
  %6 = xla_tuple %s4, %s5
  %s7 = sld [smem:[#allocation0]]
  $region73: #{tpu_custom_call.1} parent=0
    _
  %s9 = ssub.s32 1, %s7
  %s10 = scalar_select 0, %s9, %s7
  $region1: #{tpu_custom_call.1} parent=0
    #allocation2 [shape = 'u8[16384]{0}', space=vmem, size = 0x4000, scoped, tag = 'input window, operand 0']
    #allocation3 [shape = 's32[2]{0}', space=sflag, size = 0x8, scoped, tag = 'scoped memory for tpu_custom_call.1']
    #allocation4 [shape = 's32[2]{0}', space=sflag, size = 0x8, scoped, tag = 'scoped memory for tpu_custom_call.1']
    #allocation5 [shape = 'u8[16384]{0}', space=vmem, size = 0x4000, scoped, tag = 'input window, operand 1']
    #allocation6 [shape = 's32[2]{0}', space=sflag, size = 0x8, scoped, tag = 'scoped memory for tpu_custom_call.1']
    #allocation7 [shape = 'u8[16384]{0}', space=vmem, size = 0x4000, scoped, tag = 'input window, operand 2']
    #allocation8 [shape = 'u8[8192]{0}', space=vmem, size = 0x2000, scoped, tag = 'input window, operand 3']
    #allocation9 [shape = 's32[2]{0}', space=sflag, size = 0x8, scoped, tag = 'scoped memory for tpu_custom_call.1']
    #allocation10 [shape = 'u8[8192]{0}', space=vmem, size = 0x2000, scoped, tag = 'output window, operand 0']
    #allocation11 [shape = 'u8[16384]{0}', space=vmem, size = 0x4000, scoped, tag = 'output window, operand 1']
    #allocation12 [shape = 's32[2]{0}', space=sflag, size = 0x8, scoped, tag = 'scoped memory for tpu_custom_call.1']
    %11 = vsyncpa [#allocation3], 0
    %s12 = scalar_lea.sflag [#allocation3], 1
    %13 = vsyncpa %s12, 0
    %14 = vsyncpa [#allocation6], 0
    %s15 = scalar_lea.sflag [#allocation6], 1
    %16 = vsyncpa %s15, 0
    %17 = vsyncpa [#allocation9], 0
    %s18 = scalar_lea.sflag [#allocation9], 1
    %19 = vsyncpa %s18, 0
    %20 = vsyncpa [#allocation4], 0
    %s21 = scalar_lea.sflag [#allocation4], 1
    %22 = vsyncpa %s21, 0
    %23 = vsyncpa [#allocation12], 0
    %s24 = scalar_lea.sflag [#allocation12], 1
    %25 = vsyncpa %s24, 0
    loop: start=0, step=1, limit=4
    $region2: #{tpu_custom_call.1} parent=1 // loop_pre_header
      _
    $region3: #{tpu_custom_call.1} parent=1 // loop_header
      %s27 = sphi 0, %s31
      %p28 = scmp.ge.s32.totalorder %s27, 4
      %s37 = sphi 0, %s39
      %s40 = sphi 0, %s37
      %s41 = sphi 0, %s40
      %s57 = sphi 0, %s41
      %s63 = sphi 0, %s65
      %s66 = sphi 0, %s63
      %s67 = sphi 0, %s66
      %s83 = sphi 0, %s67
      %s89 = sphi 0, %s91
      %s92 = sphi 0, %s89
      %s93 = sphi 0, %s92
      %s109 = sphi 0, %s93
      %s115 = sphi 0, %s117
      %s118 = sphi 0, %s115
      %s119 = sphi 0, %s118
      %s135 = sphi 0, %s119
      %s141 = sphi 0, %s143
      %s144 = sphi 0, %s141
      %s145 = sphi 0, %s144
      %s161 = sphi 0, %s145
      %s167 = sphi 0, %s169
      %s170 = sphi 0, %s167
      %s171 = sphi 0, %s170
      %s187 = sphi 0, %s171
    $region4: #{tpu_custom_call.1} parent=1 // loop_header_branch
      %30 = sbr.rel (%p28) target = $region8
    $region5: #{tpu_custom_call.1} parent=1 // loop_body
      %s32 = ssub.s32 %s27, 1
      %s33 = ssub.s32 %s27, 2
      %s34 = sadd.s32 %s27, 1
      %s35 = ssub.s32 %s27, %s34
      %p36 = scmp.eq.s32.totalorder %s35, 0
      %s38 = sadd.s32 %s37, 1
      %s39 = scalar_select %p36, %s37, %s38
      %p42 = pneg %p36
      %p43 = scmp.eq.s32.totalorder %s27, 1
      %p44 = por %p42, %p43
      %p45 = scmp.ne.s32.totalorder %s37, %s40
      %p46 = scmp.eq.s32.totalorder %s27, 0
      %p47 = por %p45, %p46
      %p48 = scmp.ne.s32.totalorder %s37, %s40
      %p49 = scmp.eq.s32.totalorder %s32, 1
      %p50 = por %p48, %p49
      %p51 = scmp.ne.s32.totalorder %s40, %s41
      %p52 = scmp.eq.s32.totalorder %s32, 0
      %p53 = por %p51, %p52
      %p54 = scmp.ne.s32.totalorder %s40, %s41
      %p55 = scmp.eq.s32.totalorder %s33, 1
      %p56 = por %p54, %p55
      %p58 = scmp.ne.s32.totalorder %s41, %s57
      %p59 = scmp.eq.s32.totalorder %s33, 0
      %p60 = por %p58, %p59
      %s61 = ssub.s32 %s27, %s34
      %p62 = scmp.eq.s32.totalorder %s61, 0
      %s64 = sadd.s32 %s63, 1
      %s65 = scalar_select %p62, %s63, %s64
      %p68 = pneg %p62
      %p69 = scmp.eq.s32.totalorder %s27, 1
      %p70 = por %p68, %p69
      %p71 = scmp.ne.s32.totalorder %s63, %s66
      %p72 = scmp.eq.s32.totalorder %s27, 0
      %p73 = por %p71, %p72
      %p74 = scmp.ne.s32.totalorder %s63, %s66
      %p75 = scmp.eq.s32.totalorder %s32, 1
      %p76 = por %p74, %p75
      %p77 = scmp.ne.s32.totalorder %s66, %s67
      %p78 = scmp.eq.s32.totalorder %s32, 0
      %p79 = por %p77, %p78
      %p80 = scmp.ne.s32.totalorder %s66, %s67
      %p81 = scmp.eq.s32.totalorder %s33, 1
      %p82 = por %p80, %p81
      %p84 = scmp.ne.s32.totalorder %s67, %s83
      %p85 = scmp.eq.s32.totalorder %s33, 0
      %p86 = por %p84, %p85
      %s87 = ssub.s32 %s27, %s34
      %p88 = scmp.eq.s32.totalorder %s87, 0
      %s90 = sadd.s32 %s89, 1
      %s91 = scalar_select %p88, %s89, %s90
      %p94 = pneg %p88
      %p95 = scmp.eq.s32.totalorder %s27, 1
      %p96 = por %p94, %p95
      %p97 = scmp.ne.s32.totalorder %s89, %s92
      %p98 = scmp.eq.s32.totalorder %s27, 0
      %p99 = por %p97, %p98
      %p100 = scmp.ne.s32.totalorder %s89, %s92
      %p101 = scmp.eq.s32.totalorder %s32, 1
      %p102 = por %p100, %p101
      %p103 = scmp.ne.s32.totalorder %s92, %s93
      %p104 = scmp.eq.s32.totalorder %s32, 0
      %p105 = por %p103, %p104
      %p106 = scmp.ne.s32.totalorder %s92, %s93
      %p107 = scmp.eq.s32.totalorder %s33, 1
      %p108 = por %p106, %p107
      %p110 = scmp.ne.s32.totalorder %s93, %s109
      %p111 = scmp.eq.s32.totalorder %s33, 0
      %p112 = por %p110, %p111
      %s113 = ssub.s32 %s27, %s34
      %p114 = scmp.eq.s32.totalorder %s113, 0
      %s116 = sadd.s32 %s115, 1
      %s117 = scalar_select %p114, %s115, %s116
      %p120 = pneg %p114
      %p121 = scmp.eq.s32.totalorder %s27, 1
      %p122 = por %p120, %p121
      %p123 = scmp.ne.s32.totalorder %s115, %s118
      %p124 = scmp.eq.s32.totalorder %s27, 0
      %p125 = por %p123, %p124
      %p126 = scmp.ne.s32.totalorder %s115, %s118
      %p127 = scmp.eq.s32.totalorder %s32, 1
      %p128 = por %p126, %p127
      %p129 = scmp.ne.s32.totalorder %s118, %s119
      %p130 = scmp.eq.s32.totalorder %s32, 0
      %p131 = por %p129, %p130
      %p132 = scmp.ne.s32.totalorder %s118, %s119
      %p133 = scmp.eq.s32.totalorder %s33, 1
      %p134 = por %p132, %p133
      %p136 = scmp.ne.s32.totalorder %s119, %s135
      %p137 = scmp.eq.s32.totalorder %s33, 0
      %p138 = por %p136, %p137
      %s139 = ssub.s32 %s27, %s34
      %p140 = scmp.eq.s32.totalorder %s139, 0
      %s142 = sadd.s32 %s141, 1
      %s143 = scalar_select %p140, %s141, %s142
      %p146 = pneg %p140
      %p147 = scmp.eq.s32.totalorder %s27, 1
      %p148 = por %p146, %p147
      %p149 = scmp.ne.s32.totalorder %s141, %s144
      %p150 = scmp.eq.s32.totalorder %s27, 0
      %p151 = por %p149, %p150
      %p152 = scmp.ne.s32.totalorder %s141, %s144
      %p153 = scmp.eq.s32.totalorder %s32, 1
      %p154 = por %p152, %p153
      %p155 = scmp.ne.s32.totalorder %s144, %s145
      %p156 = scmp.eq.s32.totalorder %s32, 0
      %p157 = por %p155, %p156
      %p158 = scmp.ne.s32.totalorder %s144, %s145
      %p159 = scmp.eq.s32.totalorder %s33, 1
      %p160 = por %p158, %p159
      %p162 = scmp.ne.s32.totalorder %s145, %s161
      %p163 = scmp.eq.s32.totalorder %s33, 0
      %p164 = por %p162, %p163
      %s165 = ssub.s32 %s27, %s34
      %p166 = scmp.eq.s32.totalorder %s165, 0
      %s168 = sadd.s32 %s167, 1
      %s169 = scalar_select %p166, %s167, %s168
      %p172 = pneg %p166
      %p173 = scmp.eq.s32.totalorder %s27, 1
      %p174 = por %p172, %p173
      %p175 = scmp.ne.s32.totalorder %s167, %s170
      %p176 = scmp.eq.s32.totalorder %s27, 0
      %p177 = por %p175, %p176
      %p178 = scmp.ne.s32.totalorder %s167, %s170
      %p179 = scmp.eq.s32.totalorder %s32, 1
      %p180 = por %p178, %p179
      %p181 = scmp.ne.s32.totalorder %s170, %s171
      %p182 = scmp.eq.s32.totalorder %s32, 0
      %p183 = por %p181, %p182
      %p184 = scmp.ne.s32.totalorder %s170, %s171
      %p185 = scmp.eq.s32.totalorder %s33, 1
      %p186 = por %p184, %p185
      %p188 = scmp.ne.s32.totalorder %s171, %s187
      %p189 = scmp.eq.s32.totalorder %s33, 0
      %p190 = por %p188, %p189
      %p191 = scmp.le.s32.totalorder 1, %s27
      %p192 = scmp.lt.s32.totalorder %s27, 3
      %p193 = pnand %p191, %p192
      %p194 = pneg %p193
      // Predicated region
      $region9: #{tpu_custom_call.1} parent=5 // pred_check
        _
      $region10: #{tpu_custom_call.1} parent=5 // pred_check_branch
        %196 = sbr.rel (%p193) target = $region12
      $region11: #{tpu_custom_call.1} parent=5 // pred_region
        %s197 = ssub.s32 %s27, 1
      $region12: #{tpu_custom_call.1} parent=5 // pred_fallthru
        _
      %p198 = scmp.lt.s32.totalorder %s27, 2
      // Predicated region
      $region13: #{tpu_custom_call.1} parent=5 // pred_check
        %p199 = pneg %p198
      $region14: #{tpu_custom_call.1} parent=5 // pred_check_branch
        %201 = sbr.rel (%p199) target = $region16
      $region15: #{tpu_custom_call.1} parent=5 // pred_region
        // Predicated region
        $region17: #{tpu_custom_call.1} parent=15 // pred_check
          %p202 = pneg %p47
        $region18: #{tpu_custom_call.1} parent=15 // pred_check_branch
          %204 = sbr.rel (%p202) target = $region20
        $region19: #{tpu_custom_call.1} parent=15 // pred_region
          %s205 = sand.u32 %s37, 1
          %s206 = scalar_lea.sflag [#allocation3], %s205
          %s207 = sand.u32 %s37, 1
          %s208 = smul.addr %s207, 16
          %s209 = scalar_lea.vmem [#allocation2], %s208
          %s211 = ssub.s32 256, 256
          %212 = vsyncadd %s206, %s211
          %s213 = smul.addr %s27, 2
          %s214 = smul.addr %s213, 128
          %s215 = scalar_lea.hbm %s0, %s214
          %s216 = sshll.u32 %s209, 4
          %s217 = int_to_ptr.vmem [resolvable:$true] %s216
          %222 = dma.hbm_to_vmem [thread:$0]  %s215, 256, %s217, %s206, 128, 128, 8
        $region20: #{tpu_custom_call.1} parent=15 // pred_fallthru
          _
        // Predicated region
        $region21: #{tpu_custom_call.1} parent=15 // pred_check
          %p223 = pneg %p73
        $region22: #{tpu_custom_call.1} parent=15 // pred_check_branch
          %225 = sbr.rel (%p223) target = $region24
        $region23: #{tpu_custom_call.1} parent=15 // pred_region
          %s226 = sand.u32 %s27, 1
          %s227 = scalar_lea.sflag [#allocation6], %s226
          %s228 = sand.u32 %s63, 1
          %s229 = smul.addr %s228, 16
          %s230 = scalar_lea.vmem [#allocation5], %s229
          %s232 = ssub.s32 256, 256
          %233 = vsyncadd %s227, %s232
          %s234 = smul.addr %s27, 2
          %s235 = smul.addr %s234, 128
          %s236 = scalar_lea.hbm %s1, %s235
          %s237 = sshll.u32 %s230, 4
          %s238 = int_to_ptr.vmem [resolvable:$true] %s237
          %243 = dma.hbm_to_vmem [thread:$0]  %s236, 256, %s238, %s227, 128, 128, 8
        $region24: #{tpu_custom_call.1} parent=15 // pred_fallthru
          _
        // Predicated region
        $region25: #{tpu_custom_call.1} parent=15 // pred_check
          %p244 = pneg %p99
        $region26: #{tpu_custom_call.1} parent=15 // pred_check_branch
          %246 = sbr.rel (%p244) target = $region28
        $region27: #{tpu_custom_call.1} parent=15 // pred_region
          %s247 = sand.u32 %s27, 1
          %s248 = scalar_lea.sflag [#allocation6], %s247
          %s249 = sand.u32 %s89, 1
          %s250 = smul.addr %s249, 16
          %s251 = scalar_lea.vmem [#allocation7], %s250
          %s253 = ssub.s32 256, 256
          %254 = vsyncadd %s248, %s253
          %s255 = smul.addr %s27, 2
          %s256 = smul.addr %s255, 128
          %s257 = scalar_lea.hbm %s2, %s256
          %s258 = sshll.u32 %s251, 4
          %s259 = int_to_ptr.vmem [resolvable:$true] %s258
          %264 = dma.hbm_to_vmem [thread:$0]  %s257, 256, %s259, %s248, 128, 128, 8
        $region28: #{tpu_custom_call.1} parent=15 // pred_fallthru
          _
        // Predicated region
        $region29: #{tpu_custom_call.1} parent=15 // pred_check
          %p265 = pneg %p125
        $region30: #{tpu_custom_call.1} parent=15 // pred_check_branch
          %267 = sbr.rel (%p265) target = $region32
        $region31: #{tpu_custom_call.1} parent=15 // pred_region
          %s268 = sand.u32 %s115, 1
          %s269 = scalar_lea.sflag [#allocation9], %s268
          %s270 = sand.u32 %s115, 1
          %s271 = smul.addr %s270, 8
          %s272 = scalar_lea.vmem [#allocation8], %s271
          %s274 = ssub.s32 128, 128
          %275 = vsyncadd %s269, %s274
          %s276 = smul.addr %s27, 128
          %s277 = scalar_lea.hbm %s3, %s276
          %s279 = sshll.u32 %s272, 4
          %s280 = int_to_ptr.vmem [resolvable:$true] %s279
          %282 = dma.hbm_to_vmem [thread:$0]  %s277, 128, %s280, %s269
        $region32: #{tpu_custom_call.1} parent=15 // pred_fallthru
          _
      $region16: #{tpu_custom_call.1} parent=5 // pred_fallthru
        _
      %p283 = scmp.le.s32.totalorder 1, %s27
      %p284 = scmp.lt.s32.totalorder %s27, 3
      %p285 = pnand %p283, %p284
      %p286 = pneg %p285
      // Predicated region
      $region33: #{tpu_custom_call.1} parent=5 // pred_check
        _
      $region34: #{tpu_custom_call.1} parent=5 // pred_check_branch
        %288 = sbr.rel (%p285) target = $region36
      $region35: #{tpu_custom_call.1} parent=5 // pred_region
        %s289 = ssub.s32 %s27, 1
        %s290 = sand.u32 %s40, 1
        %s291 = scalar_lea.sflag [#allocation3], %s290
        %s292 = sand.u32 %s40, 1
        %s293 = smul.addr %s292, 16
        %s294 = scalar_lea.vmem [#allocation2], %s293
        // Predicated region
        $region37: #{tpu_custom_call.1} parent=35 // pred_check
          %p295 = pneg %p53
        $region38: #{tpu_custom_call.1} parent=35 // pred_check_branch
          %297 = sbr.rel (%p295) target = $region40
        $region39: #{tpu_custom_call.1} parent=35 // pred_region
          %298 = dma.done %s291, 256
        $region40: #{tpu_custom_call.1} parent=35 // pred_fallthru
          _
        %s299 = sand.u32 %s32, 1
        %s300 = scalar_lea.sflag [#allocation6], %s299
        %s301 = sand.u32 %s66, 1
        %s302 = smul.addr %s301, 16
        %s303 = scalar_lea.vmem [#allocation5], %s302
        // Predicated region
        $region41: #{tpu_custom_call.1} parent=35 // pred_check
          %p304 = pneg %p79
        $region42: #{tpu_custom_call.1} parent=35 // pred_check_branch
          %306 = sbr.rel (%p304) target = $region44
        $region43: #{tpu_custom_call.1} parent=35 // pred_region
          %307 = dma.done %s300, 256
        $region44: #{tpu_custom_call.1} parent=35 // pred_fallthru
          _
        %s308 = sand.u32 %s32, 1
        %s309 = scalar_lea.sflag [#allocation6], %s308
        %s310 = sand.u32 %s92, 1
        %s311 = smul.addr %s310, 16
        %s312 = scalar_lea.vmem [#allocation7], %s311
        // Predicated region
        $region45: #{tpu_custom_call.1} parent=35 // pred_check
          %p313 = pneg %p105
        $region46: #{tpu_custom_call.1} parent=35 // pred_check_branch
          %315 = sbr.rel (%p313) target = $region48
        $region47: #{tpu_custom_call.1} parent=35 // pred_region
          %316 = dma.done %s309, 256
        $region48: #{tpu_custom_call.1} parent=35 // pred_fallthru
          _
        %s317 = sand.u32 %s118, 1
        %s318 = scalar_lea.sflag [#allocation9], %s317
        %s319 = sand.u32 %s118, 1
        %s320 = smul.addr %s319, 8
        %s321 = scalar_lea.vmem [#allocation8], %s320
        // Predicated region
        $region49: #{tpu_custom_call.1} parent=35 // pred_check
          %p322 = pneg %p131
        $region50: #{tpu_custom_call.1} parent=35 // pred_check_branch
          %324 = sbr.rel (%p322) target = $region52
        $region51: #{tpu_custom_call.1} parent=35 // pred_region
          %325 = dma.done %s318, 128
        $region52: #{tpu_custom_call.1} parent=35 // pred_fallthru
          _
        %s326 = sand.u32 %s40, 1
        %s327 = scalar_lea.sflag [#allocation3], %s326
        %s328 = sand.u32 %s40, 1
        %s329 = smul.addr %s328, 16
        %s330 = scalar_lea.vmem [#allocation2], %s329
        %p331 = pneg %p53
        %p332 = pneg %p50
        %s333 = sand.u32 %s32, 1
        %s334 = scalar_lea.sflag [#allocation6], %s333
        %s335 = sand.u32 %s66, 1
        %s336 = smul.addr %s335, 16
        %s337 = scalar_lea.vmem [#allocation5], %s336
        %p338 = pneg %p79
        %p339 = pneg %p76
        %s340 = sand.u32 %s32, 1
        %s341 = scalar_lea.sflag [#allocation6], %s340
        %s342 = sand.u32 %s92, 1
        %s343 = smul.addr %s342, 16
        %s344 = scalar_lea.vmem [#allocation7], %s343
        %p345 = pneg %p105
        %p346 = pneg %p102
        %s347 = sand.u32 %s118, 1
        %s348 = scalar_lea.sflag [#allocation9], %s347
        %s349 = sand.u32 %s118, 1
        %s350 = smul.addr %s349, 8
        %s351 = scalar_lea.vmem [#allocation8], %s350
        %p352 = pneg %p131
        %p353 = pneg %p128
        %p354 = pneg %p157
        %p355 = pneg %p154
        %s356 = sand.u32 %s144, 1
        %s357 = scalar_lea.sflag [#allocation4], %s356
        %s358 = sand.u32 %s144, 1
        %s359 = smul.addr %s358, 8
        %s360 = scalar_lea.vmem [#allocation10], %s359
        %p361 = pneg %p183
        %p362 = pneg %p180
        %s363 = sand.u32 %s170, 1
        %s364 = scalar_lea.sflag [#allocation12], %s363
        %s365 = sand.u32 %s170, 1
        %s366 = smul.addr %s365, 16
        %s367 = scalar_lea.vmem [#allocation11], %s366
        %v368 = vld [vmem:[%s294] sm:$0xff]
        %v369 = vld [vmem:[%s294 + $0x8] sm:$0xff]
        %v370 = vld [vmem:[%s303] sm:$0xff]
        %v371 = vld [vmem:[%s303 + $0x8] sm:$0xff]
        %v372 = vld [vmem:[%s312] sm:$0xff]
        %v373 = vld [vmem:[%s312 + $0x8] sm:$0xff]
        %v374 = vmul.f32 %v368, 0.17677669
        %v375 = vmul.f32 %v369, 0.17677669
        %vm376 = vcmask 130048
        %v378 = vsel %vm376, %v374, 0
        %v381 = vsel %vm376, %v370, 0
        %383 = vmatprep.subr.mxu0 0.0
        %384 = vmatpush1.xpose.msra.mxu0 0.0
        %385 = vmatprep.subr.mxu0 0.0
        %386 = vmatpush1.xpose.msra.mxu0 0.0
        %387 = vmatprep.subr.mxu0 0.0
        %388 = vmatpush1.xpose.msra.mxu0 0.0
        %389 = vmatprep.subr.mxu0 0.0
        %390 = vmatpush1.xpose.msra.mxu0 0.0
        %391 = vmatprep.subr.mxu0 0.0
        %392 = vmatpush1.xpose.msra.mxu0 0.0
        %393 = vmatprep.subr.mxu0 0.0
        %394 = vmatpush1.xpose.msra.mxu0 0.0
        %395 = vmatprep.subr.mxu0 0.0
        %396 = vmatpush1.xpose.msra.mxu0 0.0
        %397 = vmatprep.subr.mxu0 0.0
        %398 = vmatpush1.xpose.msra.mxu0 0.0
        %399 = vmatprep.subr.mxu0 0.0
        %400 = vmatpush1.xpose.msra.mxu0 0.0
        %401 = vmatprep.subr.mxu0 0.0
        %402 = vmatpush1.xpose.msra.mxu0 0.0
        %403 = vmatprep.subr.mxu0 0.0
        %404 = vmatpush1.xpose.msra.mxu0 0.0
        %405 = vmatprep.subr.mxu0 0.0
        %406 = vmatpush1.xpose.msra.mxu0 0.0
        %407 = vmatprep.subr.mxu0 0.0
        %408 = vmatpush1.xpose.msra.mxu0 0.0
        %409 = vmatprep.subr.mxu0 0.0
        %410 = vmatpush1.xpose.msra.mxu0 0.0
        %411 = vmatprep.subr.mxu0 0.0
        %412 = vmatpush1.xpose.msra.mxu0 0.0
        %413 = vmatprep.subr.mxu0 0.0
        %414 = vmatpush1.xpose.msra.mxu0 %v381
        %415 = vmatprep.subr.mxu0 0.0
        %416 = vmatpush2.xpose.msra.mxu0 0.0
        %417 = vmatprep.subr.mxu0 0.0
        %418 = vmatpush2.xpose.msra.mxu0 0.0
        %419 = vmatprep.subr.mxu0 0.0
        %420 = vmatpush2.xpose.msra.mxu0 0.0
        %421 = vmatprep.subr.mxu0 0.0
        %422 = vmatpush2.xpose.msra.mxu0 0.0
        %423 = vmatprep.subr.mxu0 0.0
        %424 = vmatpush2.xpose.msra.mxu0 0.0
        %425 = vmatprep.subr.mxu0 0.0
        %426 = vmatpush2.xpose.msra.mxu0 0.0
        %427 = vmatprep.subr.mxu0 0.0
        %428 = vmatpush2.xpose.msra.mxu0 0.0
        %429 = vmatprep.subr.mxu0 0.0
        %430 = vmatpush2.xpose.msra.mxu0 0.0
        %431 = vmatprep.subr.mxu0 0.0
        %432 = vmatpush2.xpose.msra.mxu0 0.0
        %433 = vmatprep.subr.mxu0 0.0
        %434 = vmatpush2.xpose.msra.mxu0 0.0
        %435 = vmatprep.subr.mxu0 0.0
        %436 = vmatpush2.xpose.msra.mxu0 0.0
        %437 = vmatprep.subr.mxu0 0.0
        %438 = vmatpush2.xpose.msra.mxu0 0.0
        %439 = vmatprep.subr.mxu0 0.0
        %440 = vmatpush2.xpose.msra.mxu0 0.0
        %441 = vmatprep.subr.mxu0 0.0
        %442 = vmatpush2.xpose.msra.mxu0 0.0
        %443 = vmatprep.subr.mxu0 0.0
        %444 = vmatpush2.xpose.msra.mxu0 0.0
        %445 = vmatprep.subr.mxu0 0.0
        %446 = vmatpush2.xpose.msra.mxu0 0.0
        %447 = vmatprep.mubr.f32.mxu0 0.0
        %448 = vmatmul.mubr.f32.gmra.mxu0 %v378
        %v449 = vpop.f32.mrf.mxu0
        %v450 = vadd.f32 0.0, %v449
        %v451 = vpop.f32.mrf.mxu0
        %452 = vdwg.mxu0
        %v454 = vsel %vm376, %v375, 0
        %v457 = vsel %vm376, %v371, 0
        %459 = vmatprep.subr.mxu0 0.0
        %460 = vmatpush1.xpose.msra.mxu0 0.0
        %461 = vmatprep.subr.mxu0 0.0
        %462 = vmatpush1.xpose.msra.mxu0 0.0
        %463 = vmatprep.subr.mxu0 0.0
        %464 = vmatpush1.xpose.msra.mxu0 0.0
        %465 = vmatprep.subr.mxu0 0.0
        %466 = vmatpush1.xpose.msra.mxu0 0.0
        %467 = vmatprep.subr.mxu0 0.0
        %468 = vmatpush1.xpose.msra.mxu0 0.0
        %469 = vmatprep.subr.mxu0 0.0
        %470 = vmatpush1.xpose.msra.mxu0 0.0
        %471 = vmatprep.subr.mxu0 0.0
        %472 = vmatpush1.xpose.msra.mxu0 0.0
        %473 = vmatprep.subr.mxu0 0.0
        %474 = vmatpush1.xpose.msra.mxu0 0.0
        %475 = vmatprep.subr.mxu0 0.0
        %476 = vmatpush1.xpose.msra.mxu0 0.0
        %477 = vmatprep.subr.mxu0 0.0
        %478 = vmatpush1.xpose.msra.mxu0 0.0
        %479 = vmatprep.subr.mxu0 0.0
        %480 = vmatpush1.xpose.msra.mxu0 0.0
        %481 = vmatprep.subr.mxu0 0.0
        %482 = vmatpush1.xpose.msra.mxu0 0.0
        %483 = vmatprep.subr.mxu0 0.0
        %484 = vmatpush1.xpose.msra.mxu0 0.0
        %485 = vmatprep.subr.mxu0 0.0
        %486 = vmatpush1.xpose.msra.mxu0 0.0
        %487 = vmatprep.subr.mxu0 0.0
        %488 = vmatpush1.xpose.msra.mxu0 0.0
        %489 = vmatprep.subr.mxu0 0.0
        %490 = vmatpush1.xpose.msra.mxu0 %v457
        %491 = vmatprep.subr.mxu0 0.0
        %492 = vmatpush2.xpose.msra.mxu0 0.0
        %493 = vmatprep.subr.mxu0 0.0
        %494 = vmatpush2.xpose.msra.mxu0 0.0
        %495 = vmatprep.subr.mxu0 0.0
        %496 = vmatpush2.xpose.msra.mxu0 0.0
        %497 = vmatprep.subr.mxu0 0.0
        %498 = vmatpush2.xpose.msra.mxu0 0.0
        %499 = vmatprep.subr.mxu0 0.0
        %500 = vmatpush2.xpose.msra.mxu0 0.0
        %501 = vmatprep.subr.mxu0 0.0
        %502 = vmatpush2.xpose.msra.mxu0 0.0
        %503 = vmatprep.subr.mxu0 0.0
        %504 = vmatpush2.xpose.msra.mxu0 0.0
        %505 = vmatprep.subr.mxu0 0.0
        %506 = vmatpush2.xpose.msra.mxu0 0.0
        %507 = vmatprep.subr.mxu0 0.0
        %508 = vmatpush2.xpose.msra.mxu0 0.0
        %509 = vmatprep.subr.mxu0 0.0
        %510 = vmatpush2.xpose.msra.mxu0 0.0
        %511 = vmatprep.subr.mxu0 0.0
        %512 = vmatpush2.xpose.msra.mxu0 0.0
        %513 = vmatprep.subr.mxu0 0.0
        %514 = vmatpush2.xpose.msra.mxu0 0.0
        %515 = vmatprep.subr.mxu0 0.0
        %516 = vmatpush2.xpose.msra.mxu0 0.0
        %517 = vmatprep.subr.mxu0 0.0
        %518 = vmatpush2.xpose.msra.mxu0 0.0
        %519 = vmatprep.subr.mxu0 0.0
        %520 = vmatpush2.xpose.msra.mxu0 0.0
        %521 = vmatprep.subr.mxu0 0.0
        %522 = vmatpush2.xpose.msra.mxu0 0.0
        %523 = vmatprep.mubr.f32.mxu0 0.0
        %524 = vmatmul.mubr.f32.gmra.mxu0 %v454
        %v525 = vpop.f32.mrf.mxu0
        %v526 = vadd.f32 0.0, %v525
        %v527 = vpop.f32.mrf.mxu0
        %528 = vdwg.mxu0
        %v529 = vld [vmem:[%s321] sm:$0xff]
        %vm530 = vcmp.ne.f32.partialorder %v529, 0.0
        %v531 = vsel %vm530, 1, 0
        %vm532 = vcmp.eq.s32.totalorder %v531, 1
        %v533 = vsel %vm532, %v450, -1e+09
        %v534 = vsel %vm532, %v526, -1e+09
        %vm535 = vcmask 64512
        %v536 = vsel %vm535, %v533, -inf
        %537 = vmax.xlane.f32.xlu0 %v536
        %v538 = vpop.xlane.xlu0 %537
        %v539 = vsel %vm535, %v534, -inf
        %540 = vmax.xlane.f32.xlu0 %v539
        %v541 = vpop.xlane.xlu0 %540
        %v542 = vsub.f32 %v533, %v538
        %v543 = vsub.f32 %v534, %v541
        %v544 = vmul.f32 %v542, 1.442695
        %v545 = vpow.pop %v544
        %v546 = vmul.f32 %v543, 1.442695
        %v547 = vpow.pop %v546
        %v548 = vsel %vm535, %v545, 0.0
        %549 = vadd.xlane.f32.xlu0 %v548
        %v550 = vpop.xlane.xlu0 %549
        %v551 = vsel %vm535, %v547, 0.0
        %552 = vadd.xlane.f32.xlu0 %v551
        %v553 = vpop.xlane.xlu0 %552
        %v554 = vrcp.pop %v550
        %v555 = vrcp.pop %v553
        %v556 = vmul.f32 %v550, %v554
        %v557 = vmul.f32 %v553, %v555
        %v558 = vsub.f32 2.0, %v556
        %v559 = vsub.f32 2.0, %v557
        %v560 = vmul.f32 %v554, %v558
        %v561 = vmul.f32 %v555, %v559
        %v562 = vmul.f32 %v545, %v560
        %v563 = vmul.f32 %v547, %v561
        %564 = vst.msk [vmem:[%s367] sm:$0xff] %vm535, %v562
        %565 = vst.msk [vmem:[%s367 + $0x8] sm:$0xff] %vm535, %v563
        %v567 = vsel %vm535, %v562, 0
        %569 = vmatprep.subr.mxu0 0.0
        %570 = vmatpush1.msra.mxu0 0.0
        %571 = vmatprep.subr.mxu0 0.0
        %572 = vmatpush1.msra.mxu0 0.0
        %573 = vmatprep.subr.mxu0 0.0
        %574 = vmatpush1.msra.mxu0 0.0
        %575 = vmatprep.subr.mxu0 0.0
        %576 = vmatpush1.msra.mxu0 0.0
        %577 = vmatprep.subr.mxu0 0.0
        %578 = vmatpush1.msra.mxu0 0.0
        %579 = vmatprep.subr.mxu0 0.0
        %580 = vmatpush1.msra.mxu0 0.0
        %581 = vmatprep.subr.mxu0 0.0
        %582 = vmatpush1.msra.mxu0 0.0
        %583 = vmatprep.subr.mxu0 0.0
        %584 = vmatpush1.msra.mxu0 0.0
        %585 = vmatprep.subr.mxu0 0.0
        %586 = vmatpush1.msra.mxu0 0.0
        %587 = vmatprep.subr.mxu0 0.0
        %588 = vmatpush1.msra.mxu0 0.0
        %589 = vmatprep.subr.mxu0 0.0
        %590 = vmatpush1.msra.mxu0 0.0
        %591 = vmatprep.subr.mxu0 0.0
        %592 = vmatpush1.msra.mxu0 0.0
        %593 = vmatprep.subr.mxu0 0.0
        %594 = vmatpush1.msra.mxu0 0.0
        %595 = vmatprep.subr.mxu0 0.0
        %596 = vmatpush1.msra.mxu0 0.0
        %597 = vmatprep.subr.mxu0 0.0
        %598 = vmatpush1.msra.mxu0 0.0
        %599 = vmatprep.subr.mxu0 0.0
        %600 = vmatpush1.msra.mxu0 %v372
        %601 = vmatprep.subr.mxu0 0.0
        %602 = vmatpush2.msra.mxu0 0.0
        %603 = vmatprep.subr.mxu0 0.0
        %604 = vmatpush2.msra.mxu0 0.0
        %605 = vmatprep.subr.mxu0 0.0
        %606 = vmatpush2.msra.mxu0 0.0
        %607 = vmatprep.subr.mxu0 0.0
        %608 = vmatpush2.msra.mxu0 0.0
        %609 = vmatprep.subr.mxu0 0.0
        %610 = vmatpush2.msra.mxu0 0.0
        %611 = vmatprep.subr.mxu0 0.0
        %612 = vmatpush2.msra.mxu0 0.0
        %613 = vmatprep.subr.mxu0 0.0
        %614 = vmatpush2.msra.mxu0 0.0
        %615 = vmatprep.subr.mxu0 0.0
        %616 = vmatpush2.msra.mxu0 0.0
        %617 = vmatprep.subr.mxu0 0.0
        %618 = vmatpush2.msra.mxu0 0.0
        %619 = vmatprep.subr.mxu0 0.0
        %620 = vmatpush2.msra.mxu0 0.0
        %621 = vmatprep.subr.mxu0 0.0
        %622 = vmatpush2.msra.mxu0 0.0
        %623 = vmatprep.subr.mxu0 0.0
        %624 = vmatpush2.msra.mxu0 0.0
        %625 = vmatprep.subr.mxu0 0.0
        %626 = vmatpush2.msra.mxu0 0.0
        %627 = vmatprep.subr.mxu0 0.0
        %628 = vmatpush2.msra.mxu0 0.0
        %629 = vmatprep.subr.mxu0 0.0
        %630 = vmatpush2.msra.mxu0 0.0
        %631 = vmatprep.subr.mxu0 0.0
        %632 = vmatpush2.msra.mxu0 0.0
        %633 = vmatprep.mubr.f32.mxu0 0.0
        %634 = vmatmul.mubr.f32.gmra.mxu0 %v567
        %v635 = vpop.f32.mrf.mxu0
        %v636 = vadd.f32 0.0, %v635
        %v637 = vpop.f32.mrf.mxu0
        %638 = vdwg.mxu0
        %v640 = vsel %vm535, %v563, 0
        %642 = vmatprep.subr.mxu0 0.0
        %643 = vmatpush1.msra.mxu0 0.0
        %644 = vmatprep.subr.mxu0 0.0
        %645 = vmatpush1.msra.mxu0 0.0
        %646 = vmatprep.subr.mxu0 0.0
        %647 = vmatpush1.msra.mxu0 0.0
        %648 = vmatprep.subr.mxu0 0.0
        %649 = vmatpush1.msra.mxu0 0.0
        %650 = vmatprep.subr.mxu0 0.0
        %651 = vmatpush1.msra.mxu0 0.0
        %652 = vmatprep.subr.mxu0 0.0
        %653 = vmatpush1.msra.mxu0 0.0
        %654 = vmatprep.subr.mxu0 0.0
        %655 = vmatpush1.msra.mxu0 0.0
        %656 = vmatprep.subr.mxu0 0.0
        %657 = vmatpush1.msra.mxu0 0.0
        %658 = vmatprep.subr.mxu0 0.0
        %659 = vmatpush1.msra.mxu0 0.0
        %660 = vmatprep.subr.mxu0 0.0
        %661 = vmatpush1.msra.mxu0 0.0
        %662 = vmatprep.subr.mxu0 0.0
        %663 = vmatpush1.msra.mxu0 0.0
        %664 = vmatprep.subr.mxu0 0.0
        %665 = vmatpush1.msra.mxu0 0.0
        %666 = vmatprep.subr.mxu0 0.0
        %667 = vmatpush1.msra.mxu0 0.0
        %668 = vmatprep.subr.mxu0 0.0
        %669 = vmatpush1.msra.mxu0 0.0
        %670 = vmatprep.subr.mxu0 0.0
        %671 = vmatpush1.msra.mxu0 0.0
        %672 = vmatprep.subr.mxu0 0.0
        %673 = vmatpush1.msra.mxu0 %v373
        %674 = vmatprep.subr.mxu0 0.0
        %675 = vmatpush2.msra.mxu0 0.0
        %676 = vmatprep.subr.mxu0 0.0
        %677 = vmatpush2.msra.mxu0 0.0
        %678 = vmatprep.subr.mxu0 0.0
        %679 = vmatpush2.msra.mxu0 0.0
        %680 = vmatprep.subr.mxu0 0.0
        %681 = vmatpush2.msra.mxu0 0.0
        %682 = vmatprep.subr.mxu0 0.0
        %683 = vmatpush2.msra.mxu0 0.0
        %684 = vmatprep.subr.mxu0 0.0
        %685 = vmatpush2.msra.mxu0 0.0
        %686 = vmatprep.subr.mxu0 0.0
        %687 = vmatpush2.msra.mxu0 0.0
        %688 = vmatprep.subr.mxu0 0.0
        %689 = vmatpush2.msra.mxu0 0.0
        %690 = vmatprep.subr.mxu0 0.0
        %691 = vmatpush2.msra.mxu0 0.0
        %692 = vmatprep.subr.mxu0 0.0
        %693 = vmatpush2.msra.mxu0 0.0
        %694 = vmatprep.subr.mxu0 0.0
        %695 = vmatpush2.msra.mxu0 0.0
        %696 = vmatprep.subr.mxu0 0.0
        %697 = vmatpush2.msra.mxu0 0.0
        %698 = vmatprep.subr.mxu0 0.0
        %699 = vmatpush2.msra.mxu0 0.0
        %700 = vmatprep.subr.mxu0 0.0
        %701 = vmatpush2.msra.mxu0 0.0
        %702 = vmatprep.subr.mxu0 0.0
        %703 = vmatpush2.msra.mxu0 0.0
        %704 = vmatprep.subr.mxu0 0.0
        %705 = vmatpush2.msra.mxu0 0.0
        %706 = vmatprep.mubr.f32.mxu0 0.0
        %707 = vmatmul.mubr.f32.gmra.mxu0 %v640
        %v708 = vpop.f32.mrf.mxu0
        %v709 = vadd.f32 0.0, %v708
        %v710 = vpop.f32.mrf.mxu0
        %711 = vdwg.mxu0
        %v712 = vcombine.high %v636, 0.0
        %v714 = vunpack.c.l.s4 1983009808
        %v715 = vunpack.c.0.s8 %v714
        %v716 = vlaneseq
        %v717 = vshrl.u32 %v716, 7
        %v718 = vsub.s32 %v715, %v717
        %v719 = vrot.slane %v636, %v718
        %v721 = vunpack.c.l.s4 1983009808
        %v722 = vunpack.c.0.s8 %v721
        %v723 = vlaneseq
        %v724 = vshrl.u32 %v723, 7
        %v725 = vsub.s32 %v722, %v724
        %v726 = vrot.slane %v712, %v725
        %v727 = vcombine.high %v709, 0.0
        %v729 = vunpack.c.l.s4 1983009808
        %v730 = vunpack.c.0.s8 %v729
        %v731 = vlaneseq
        %v732 = vshrl.u32 %v731, 7
        %v733 = vsub.s32 %v730, %v732
        %v734 = vrot.slane %v709, %v733
        %v736 = vunpack.c.l.s4 1983009808
        %v737 = vunpack.c.0.s8 %v736
        %v738 = vlaneseq
        %v739 = vshrl.u32 %v738, 7
        %v740 = vsub.s32 %v737, %v739
        %v741 = vrot.slane %v727, %v740
        %v742 = vcombine.low %v719, %v734
        %v743 = vcombine.high %v719, %v734
        %v745 = vunpack.c.l.s4 1934713408
        %v746 = vunpack.c.0.s8 %v745
        %v747 = vlaneseq
        %v748 = vshrl.u32 %v747, 7
        %v749 = vsub.s32 %v746, %v748
        %v750 = vrot.slane %v742, %v749
        %v752 = vunpack.c.l.s4 1934713408
        %v753 = vunpack.c.0.s8 %v752
        %v754 = vlaneseq
        %v755 = vshrl.u32 %v754, 7
        %v756 = vsub.s32 %v753, %v755
        %v757 = vrot.slane %v743, %v756
        %v758 = vcombine.low %v726, %v741
        %v759 = vcombine.high %v726, %v741
        %v761 = vunpack.c.l.s4 1934713408
        %v762 = vunpack.c.0.s8 %v761
        %v763 = vlaneseq
        %v764 = vshrl.u32 %v763, 7
        %v765 = vsub.s32 %v762, %v764
        %v766 = vrot.slane %v758, %v765
        %v768 = vunpack.c.l.s4 1934713408
        %v769 = vunpack.c.0.s8 %v768
        %v770 = vlaneseq
        %v771 = vshrl.u32 %v770, 7
        %v772 = vsub.s32 %v769, %v771
        %v773 = vrot.slane %v759, %v772
        %v774 = vcombine.high %v750, 0.0
        %v775 = vcombine.high %v757, 0.0
        %v776 = vcombine.high %v766, 0.0
        %v777 = vcombine.high %v773, 0.0
        %v778 = vcombine.low %v750, %v757
        %v780 = vunpack.c.l.s4 1983009808
        %v781 = vunpack.c.0.s8 %v780
        %v782 = vlaneseq
        %v783 = vshrl.u32 %v782, 7
        %v784 = vsub.s32 %v781, %v783
        %v785 = vrot.slane %v778, %v784
        %v786 = vcombine.low %v774, %v775
        %v788 = vunpack.c.l.s4 1983009808
        %v789 = vunpack.c.0.s8 %v788
        %v790 = vlaneseq
        %v791 = vshrl.u32 %v790, 7
        %v792 = vsub.s32 %v789, %v791
        %v793 = vrot.slane %v786, %v792
        %v794 = vcombine.low %v766, %v773
        %v796 = vunpack.c.l.s4 1983009808
        %v797 = vunpack.c.0.s8 %v796
        %v798 = vlaneseq
        %v799 = vshrl.u32 %v798, 7
        %v800 = vsub.s32 %v797, %v799
        %v801 = vrot.slane %v794, %v800
        %v802 = vcombine.low %v776, %v777
        %v804 = vunpack.c.l.s4 1983009808
        %v805 = vunpack.c.0.s8 %v804
        %v806 = vlaneseq
        %v807 = vshrl.u32 %v806, 7
        %v808 = vsub.s32 %v805, %v807
        %v809 = vrot.slane %v802, %v808
        %v810 = vcombine.low %v785, %v793
        %v812 = vunpack.c.l.s4 1934713408
        %v813 = vunpack.c.0.s8 %v812
        %v814 = vlaneseq
        %v815 = vshrl.u32 %v814, 7
        %v816 = vsub.s32 %v813, %v815
        %v817 = vrot.slane %v810, %v816
        %v818 = vcombine.low %v801, %v809
        %v820 = vunpack.c.l.s4 1934713408
        %v821 = vunpack.c.0.s8 %v820
        %v822 = vlaneseq
        %v823 = vshrl.u32 %v822, 7
        %v824 = vsub.s32 %v821, %v823
        %v825 = vrot.slane %v818, %v824
        %v826 = vcombine.low %v817, %v825
        %v827 = vcombine.high %v817, %v825
        %829 = vrot.lane.b32.xlu0 %v827, 16
        %v830 = vpop.permute.xlu0 %829
        %v832 = vsel %vm376, %v826, %v830
        %vm833 = vcmask 261120
        %834 = vst.msk [vmem:[%s360] sm:$0xff] %vm833, %v832
        %s835 = sand.u32 %s144, 1
        %s836 = scalar_lea.sflag [#allocation4], %s835
        %s837 = sand.u32 %s144, 1
        %s838 = smul.addr %s837, 8
        %s839 = scalar_lea.vmem [#allocation10], %s838
        %s840 = sand.u32 %s170, 1
        %s841 = scalar_lea.sflag [#allocation12], %s840
        %s842 = sand.u32 %s170, 1
        %s843 = smul.addr %s842, 16
        %s844 = scalar_lea.vmem [#allocation11], %s843
        // Predicated region
        $region53: #{tpu_custom_call.1} parent=35 // pred_check
          %p845 = pneg %p154
        $region54: #{tpu_custom_call.1} parent=35 // pred_check_branch
          %847 = sbr.rel (%p845) target = $region56
        $region55: #{tpu_custom_call.1} parent=35 // pred_region
          %s849 = ssub.s32 128, 128
          %850 = vsyncadd %s836, %s849
          %s851 = smul.addr %s32, 128
          %s852 = scalar_lea.hbm %s4, %s851
          %s854 = sshll.u32 %s839, 4
          %s855 = int_to_ptr.vmem [resolvable:$true] %s854
          %857 = dma.vmem_to_hbm [thread:$0]  %s855, 128, %s852, %s836
        $region56: #{tpu_custom_call.1} parent=35 // pred_fallthru
          _
        // Predicated region
        $region57: #{tpu_custom_call.1} parent=35 // pred_check
          %p858 = pneg %p180
        $region58: #{tpu_custom_call.1} parent=35 // pred_check_branch
          %860 = sbr.rel (%p858) target = $region60
        $region59: #{tpu_custom_call.1} parent=35 // pred_region
          %s862 = ssub.s32 256, 256
          %863 = vsyncadd %s841, %s862
          %s864 = smul.addr %s32, 2
          %s865 = smul.addr %s864, 128
          %s866 = scalar_lea.hbm %s5, %s865
          %s867 = sshll.u32 %s844, 4
          %s868 = int_to_ptr.vmem [resolvable:$true] %s867
          %873 = dma.vmem_to_hbm [thread:$0]  %s868, 256, %s866, %s841, 128, 128, 8
        $region60: #{tpu_custom_call.1} parent=35 // pred_fallthru
          _
      $region36: #{tpu_custom_call.1} parent=5 // pred_fallthru
        _
      %p874 = scmp.le.s32.totalorder 2, %s27
      // Predicated region
      $region61: #{tpu_custom_call.1} parent=5 // pred_check
        %p875 = pneg %p874
      $region62: #{tpu_custom_call.1} parent=5 // pred_check_branch
        %877 = sbr.rel (%p875) target = $region64
      $region63: #{tpu_custom_call.1} parent=5 // pred_region
        %s878 = ssub.s32 %s27, 2
        // Predicated region
        $region65: #{tpu_custom_call.1} parent=63 // pred_check
          %p879 = pneg %p160
        $region66: #{tpu_custom_call.1} parent=63 // pred_check_branch
          %881 = sbr.rel (%p879) target = $region68
        $region67: #{tpu_custom_call.1} parent=63 // pred_region
          %s882 = sand.u32 %s145, 1
          %s883 = scalar_lea.sflag [#allocation4], %s882
          %s884 = sand.u32 %s145, 1
          %s885 = smul.addr %s884, 8
          %s886 = scalar_lea.vmem [#allocation10], %s885
          %887 = dma.done %s883, 128
        $region68: #{tpu_custom_call.1} parent=63 // pred_fallthru
          _
        // Predicated region
        $region69: #{tpu_custom_call.1} parent=63 // pred_check
          %p888 = pneg %p186
        $region70: #{tpu_custom_call.1} parent=63 // pred_check_branch
          %890 = sbr.rel (%p888) target = $region72
        $region71: #{tpu_custom_call.1} parent=63 // pred_region
          %s891 = sand.u32 %s171, 1
          %s892 = scalar_lea.sflag [#allocation12], %s891
          %s893 = sand.u32 %s171, 1
          %s894 = smul.addr %s893, 16
          %s895 = scalar_lea.vmem [#allocation11], %s894
          %896 = dma.done %s892, 256
        $region72: #{tpu_custom_call.1} parent=63 // pred_fallthru
          _
      $region64: #{tpu_custom_call.1} parent=5 // pred_fallthru
        _
    $region6: #{tpu_custom_call.1} parent=1 // loop_footer
      %s31 = sadd.s32 1, %s27
    $region7: #{tpu_custom_call.1} parent=1 // loop_footer_branch
      %26 = sbr.rel target = $region3
    $region8: #{tpu_custom_call.1} parent=1 // loop_exit
      _
    %897 = vsyncpa [#allocation3], 1
    %s898 = scalar_lea.sflag [#allocation3], 1
    %899 = vsyncpa %s898, 1
    %900 = vsyncpa [#allocation6], 1
    %s901 = scalar_lea.sflag [#allocation6], 1
    %902 = vsyncpa %s901, 1
    %903 = vsyncpa [#allocation9], 1
    %s904 = scalar_lea.sflag [#allocation9], 1
    %905 = vsyncpa %s904, 1
    %906 = vsyncpa [#allocation4], 1
    %s907 = scalar_lea.sflag [#allocation4], 1
    %908 = vsyncpa %s907, 1
    %909 = vsyncpa [#allocation12], 1
    %s910 = scalar_lea.sflag [#allocation12], 1
    %911 = vsyncpa %s910, 1

</llo_original>
